<compile_context>
chip_gen: v5e
topology: v5e:2x2
jax: 0.10.0
libtpu: 0.0.40
codegen_flags: <defaults>
</compile_context>

<pallas_src>
import functools

import jax
import jax.numpy as jnp
from jax import lax
from jax.experimental import pallas as pl
from jax.experimental.pallas import tpu as pltpu


# ---------------------------------------------------------------------------
# Fused Pallas kernel: one batch image per grid step, everything stays in VMEM
# ---------------------------------------------------------------------------
def _fused_rup_kernel(x_ref, w1_ref, b1_ref, wd_ref, sup_ref, uh_ref, ksc_ref, b2_ref,
                      o_ref, *, H, WC):
    f32 = jnp.float32
    cdt = w1_ref.dtype                       # streamed compute dtype (f32 or bf16)

    # ---- conv1: 5x5 pad 2 + ReLU as 5 row-slab matmuls, tree-summed --------------------
    d = [jnp.dot(x_ref[0, ky:ky + H, :].astype(cdt), w1_ref[ky],
                 preferred_element_type=f32) for ky in range(5)]
    out1 = jnp.maximum((d[0] + d[1]) + (d[2] + d[3]) + d[4] + b1_ref[...], 0.0)   # (H, WC)

    # ---- deconv (ConvTranspose2d k3 s2 p1 op1): sub-pixel phases, all six phase weights
    #      lane-concatenated -> ONE wide MXU matmul against out1 ------------------------
    wide = jnp.dot(out1.astype(cdt), wd_ref[...], preferred_element_type=f32)     # (H, 6*WC)
    up_even = wide[:, 0:2 * WC]                          # [ (even,even) | (even,odd) ]
    # Odd output rows also need out1[i+1]; the row shift is an exact tiny matmul against
    # eye(H,H,k=1) (zero at the bottom edge) -- replaces the old scratch store/load.
    up_odd = wide[:, 2 * WC:4 * WC] + jnp.dot(sup_ref[...], wide[:, 4 * WC:6 * WC],
                                              preferred_element_type=f32)

    # ---- shortcut: bilinear x2 (align_corners=True) fused with the 1x1 conv,
    #      right-associated:  sc = Uh_rows @ (x_interior @ [Uw_even⊗Wsc | Uw_odd⊗Wsc]) ---
    c = jnp.dot(x_ref[0, 2:2 + H, :].astype(cdt), ksc_ref[...],
                preferred_element_type=f32)                                       # (H, 2*WC)
    sc = jnp.dot(uh_ref[...], c, preferred_element_type=f32)                      # (2H, 2*WC)

    # ---- add pre-summed bias (bt+bsc) + ReLU: two 2*WC-lane unmasked stores ------------
    bias = b2_ref[...]
    o_ref[0, 0, :, :] = jnp.maximum(up_even + sc[0:H, :] + bias, 0.0)
    o_ref[0, 1, :, :] = jnp.maximum(up_odd + sc[H:2 * H, :] + bias, 0.0)


# ---------------------------------------------------------------------------
# One-time (construction-time) weight restructuring: bake conv/deconv/bilinear
# structure into dense 2D matrices so the kernel only does clean 2D matmuls.
# Call this ONCE and reuse the result across forward calls.
# ---------------------------------------------------------------------------
def _interp_matrix(in_size, out_size):
    """Bilinear (align_corners=True) interpolation matrix, (out_size, in_size)."""
    o = jnp.arange(out_size, dtype=jnp.float32)
    s = o * (in_size - 1) / max(out_size - 1, 1)
    i0 = jnp.floor(s).astype(jnp.int32)
    i1 = jnp.minimum(i0 + 1, in_size - 1)
    w = s - i0.astype(jnp.float32)
    cols = jnp.arange(in_size)[None, :]
    return ((cols == i0[:, None]) * (1.0 - w)[:, None]
            + (cols == i1[:, None]) * w[:, None]).astype(jnp.float32)


def build_fused_weights(params, H, W, compute_dtype=jnp.float32):
    W1, b1 = params["W1"], params["b1"]        # (Cout, Cin, 5, 5), (Cout,)
    Wt, bt = params["Wt"], params["bt"]        # (Cout_in, Cout_out, 3, 3), (Cout,)
    Wsc, bsc = params["Wsc"], params["bsc"]    # (Cout, Cin, 1, 1), (Cout,)
    Cout, Cin = W1.shape[0], W1.shape[1]
    f32 = jnp.float32

    # conv1 row-slab weights: w1slab[ky][(w+kx)*Cin + ci, w*Cout + co] = W1[co, ci, ky, kx]
    w1slab = jnp.stack([
        sum(jnp.kron(jnp.eye(W + 4, W, k=-kx, dtype=f32), W1[:, :, ky, kx].T.astype(f32))
            for kx in range(5))
        for ky in range(5)], axis=0)                                  # (5, (W+4)*Cin, W*Cout)

    # deconv sub-pixel phase weights, lane-concatenated into one wide RHS:
    #   columns [0:2WC]   -> even output rows  ([col-even | col-odd], from out1[i])
    #   columns [2WC:4WC] -> odd output rows, contribution from out1[i]
    #   columns [4WC:6WC] -> odd output rows, contribution from out1[i+1] (row-shift applied in kernel)
    A = lambda a, b: Wt[:, :, a, b].astype(f32)
    I0 = jnp.eye(W, dtype=f32)
    I1 = jnp.eye(W, W, k=-1, dtype=f32)            # routes input col j+1 -> output col j
    wdcat = jnp.concatenate([
        jnp.kron(I0, A(1, 1)),                                   # (even,even)  <- out1[i, j]
        jnp.kron(I0, A(1, 2)) + jnp.kron(I1, A(1, 0)),           # (even,odd)   <- out1[i, j/j+1]
        jnp.kron(I0, A(2, 1)),                                   # (odd, even)  <- out1[i, j]
        jnp.kron(I0, A(2, 2)) + jnp.kron(I1, A(2, 0)),           # (odd, odd)   <- out1[i, *]
        jnp.kron(I0, A(0, 1)),                                   # (odd, even)  <- out1[i+1, j]
        jnp.kron(I0, A(0, 2)) + jnp.kron(I1, A(0, 0)),           # (odd, odd)   <- out1[i+1, *]
    ], axis=1)                                                   # (W*Cout, 6*W*Cout)

    # row-shift matrix for the out1[i+1] contributions (exact, zero at bottom edge)
    s_up = jnp.eye(H, H, k=1, dtype=f32)                         # (H, H)

    # shortcut: separable bilinear; column interpolation folded with the 1x1 conv.
    Uh = _interp_matrix(H, 2 * H)                                # (2H, H)
    Uw = _interp_matrix(W, 2 * W)                                # (2W, W)
    uh = jnp.concatenate([Uh[0::2], Uh[1::2]], axis=0)           # (2H, H): [even rows; odd rows]
    Wsc2d = Wsc[:, :, 0, 0].T.astype(f32)                        # (Cin, Cout)

    def col_mat(U_par):                                          # ((W+4)*Cin, W*Cout)
        core = jnp.kron(U_par.T, Wsc2d)                          # rows indexed by w*Cin+ci
        return jnp.pad(core, ((2 * Cin, 2 * Cin), (0, 0)))       # align with halo-padded lanes

    ksccat = jnp.concatenate([col_mat(Uw[0::2]), col_mat(Uw[1::2])], axis=1)  # ((W+4)*Cin, 2*W*Cout)

    b1row = jnp.tile(b1.astype(f32), W)[None, :]                 # (1, W*Cout)
    b2row = jnp.tile((bt + bsc).astype(f32), 2 * W)[None, :]     # (1, 2*W*Cout), pre-summed biases

    return dict(w1slab=w1slab.astype(compute_dtype), b1row=b1row,
                wdcat=wdcat.astype(compute_dtype), s_up=s_up, uh=uh,
                ksccat=ksccat.astype(compute_dtype), b2row=b2row)


# ---------------------------------------------------------------------------
# Forward pass (single fused Pallas kernel).  `fused` is the prebuilt weight dict.
# ---------------------------------------------------------------------------
@jax.jit
def residual_up_projection(x_nchw, fused):
    N, Cin, H, W = x_nchw.shape
    WC = fused["b1row"].shape[1]                 # W * Cout
    Cout = WC // W

    # Input re-layout (only remaining per-call prep; a producer that already emits
    # NHWC + halo can hand this layout over directly and skip the pad/transpose copy).
    x = jnp.transpose(x_nchw, (0, 2, 3, 1)).astype(jnp.float32)          # NHWC
    xp = jnp.pad(x, ((0, 0), (2, 2), (2, 2), (0, 0)))                    # halo for the 5x5 conv
    xp = xp.reshape(N, H + 4, (W + 4) * Cin)                             # (w, ci) flattened on lanes

    kernel = functools.partial(_fused_rup_kernel, H=H, WC=WC)
    c3 = lambda n: (0, 0, 0)
    c2 = lambda n: (0, 0)
    out_p = pl.pallas_call(
        kernel,
        out_shape=jax.ShapeDtypeStruct((N, 2, H, 2 * WC), jnp.float32),
        grid_spec=pltpu.PrefetchScalarGridSpec(
            num_scalar_prefetch=0,
            grid=(N,),
            in_specs=[
                pl.BlockSpec((1, H + 4, (W + 4) * Cin), lambda n: (n, 0, 0)),  # halo image tile
                pl.BlockSpec((5, (W + 4) * Cin, WC), c3),                      # conv1 slab weights
                pl.BlockSpec((1, WC), c2),                                     # conv1 bias row
                pl.BlockSpec((WC, 6 * WC), c2),                                # deconv phases (wide)
                pl.BlockSpec((H, H), c2),                                      # row-shift matrix
                pl.BlockSpec((2 * H, H), c2),                                  # row-interp (even;odd)
                pl.BlockSpec(((W + 4) * Cin, 2 * WC), c2),                     # col-interp x Wsc (wide)
                pl.BlockSpec((1, 2 * WC), c2),                                 # bt+bsc bias row
            ],
            out_specs=pl.BlockSpec((1, 2, H, 2 * WC), lambda n: (n, 0, 0, 0)),
        ),
        compiler_params=pltpu.CompilerParams(
            dimension_semantics=("parallel",),        # batch steps split across TCs (megacore / v7x)
            vmem_limit_bytes=32 * 1024 * 1024),
        # NOTE: for large W*Cout, single-buffer the constant weight streams
        # (pipeline_mode=pl.Buffered(1)) to respect v7x's 64 MiB VMEM.
    )(xp, fused["w1slab"], fused["b1row"], fused["wdcat"], fused["s_up"],
      fused["uh"], fused["ksccat"], fused["b2row"])

    # un-interleave parity phases: (n, rowpar, h, colpar*W*Cout + w*Cout + co) -> NCHW
    out = out_p.reshape(N, 2, H, 2, W, Cout)
    out = out.transpose(0, 2, 1, 4, 3, 5).reshape(N, 2 * H, 2 * W, Cout)
    return out.transpose(0, 3, 1, 2)


# ---------------------------------------------------------------------------
# Pure-JAX (XLA) reference for verification
# ---------------------------------------------------------------------------
def _bilinear_coords(in_size, out_size):
    o = jnp.arange(out_size, dtype=jnp.float32)
    s = o * (in_size - 1) / (out_size - 1)
    i0 = jnp.floor(s).astype(jnp.int32)
    i1 = jnp.minimum(i0 + 1, in_size - 1)
    w = s - i0.astype(jnp.float32)
    return i0, i1, w


def reference_forward(x_nchw, params):
    dn = ("NCHW", "OIHW", "NCHW")
    W1, b1 = params["W1"], params["b1"]
    Wt, bt = params["Wt"], params["bt"]
    Wsc, bsc = params["Wsc"], params["bsc"]
    N, Cin, H, W = x_nchw.shape
    OH, OW = 2 * H, 2 * W

    out1 = jax.nn.relu(lax.conv_general_dilated(x_nchw, W1, (1, 1), [(2, 2), (2, 2)],
                                                dimension_numbers=dn) + b1[None, :, None, None])
    Wc = jnp.flip(Wt, (2, 3)).transpose(1, 0, 2, 3)
    up = lax.conv_general_dilated(out1, Wc, (1, 1), [(1, 2), (1, 2)],
                                  lhs_dilation=(2, 2), dimension_numbers=dn) + bt[None, :, None, None]

    y0, y1, wy = _bilinear_coords(H, OH)
    x0, x1, wx = _bilinear_coords(W, OW)

    def g(yi, xi):
        return x_nchw[:, :, yi, :][:, :, :, xi]

    xu = (g(y0, x0) * ((1 - wy)[:, None] * (1 - wx)[None, :]) +
          g(y0, x1) * ((1 - wy)[:, None] * wx[None, :]) +
          g(y1, x0) * (wy[:, None] * (1 - wx)[None, :]) +
          g(y1, x1) * (wy[:, None] * wx[None, :]))
    sc = lax.conv_general_dilated(xu, Wsc, (1, 1), [(0, 0), (0, 0)],
                                  dimension_numbers=dn) + bsc[None, :, None, None]
    return jax.nn.relu(up + sc)


# ---------------------------------------------------------------------------
if __name__ == "__main__":
    N, Cin, Cout, H, W = 2, 4, 8, 16, 16

    key = jax.random.PRNGKey(0)
    k = jax.random.split(key, 7)
    params = {
        "W1":  jax.random.normal(k[0], (Cout, Cin, 5, 5), jnp.float32) * 0.1,   # Conv2d(in,out,5)
        "b1":  jax.random.normal(k[1], (Cout,), jnp.float32) * 0.1,
        "Wt":  jax.random.normal(k[2], (Cout, Cout, 3, 3), jnp.float32) * 0.1,  # ConvTranspose2d(out,out,3)
        "bt":  jax.random.normal(k[3], (Cout,), jnp.float32) * 0.1,
        "Wsc": jax.random.normal(k[4], (Cout, Cin, 1, 1), jnp.float32) * 0.1,   # Conv2d(in,out,1)
        "bsc": jax.random.normal(k[5], (Cout,), jnp.float32) * 0.1,
    }
    x = jax.random.normal(k[6], (N, Cin, H, W), jnp.float32)

    ref = jax.block_until_ready(reference_forward(x, params))

    # f32 path: strict parity with the (f32) PyTorch module semantics.
    fused_f32 = build_fused_weights(params, H, W, jnp.float32)     # built ONCE, reused every call
    out = jax.block_until_ready(residual_up_projection(x, fused_f32))
    assert out.shape == (N, Cout, 2 * H, 2 * W), out.shape
    err_f32 = float(jnp.max(jnp.abs(out - ref)))
    assert err_f32 < 2e-4, f"f32 mismatch vs reference: {err_f32}"

    # bf16 streaming path (perf config): same kernel, bf16 weights/activations into the MXU,
    # f32 accumulation.  Looser tolerance only reflects bf16 input/weight quantization.
    fused_bf16 = build_fused_weights(params, H, W, jnp.bfloat16)
    out_bf16 = jax.block_until_ready(residual_up_projection(x, fused_bf16))
    err_bf16 = float(jnp.max(jnp.abs(out_bf16 - ref)))
    assert err_bf16 < 2e-1, f"bf16 mismatch vs reference: {err_bf16}"

    print("KERNEL_OK")
</pallas_src>

<mosaic_0001>
module attributes {stable_mosaic.version = 11 : i64} {
  func.func @_fused_rup_kernel(%arg0: i32, %arg1: memref<1x20x80xf32, #tpu.memory_space<vmem>>, %arg2: memref<5x80x128xf32, #tpu.memory_space<vmem>>, %arg3: memref<1x128xf32, #tpu.memory_space<vmem>>, %arg4: memref<128x768xf32, #tpu.memory_space<vmem>>, %arg5: memref<16x16xf32, #tpu.memory_space<vmem>>, %arg6: memref<32x16xf32, #tpu.memory_space<vmem>>, %arg7: memref<80x256xf32, #tpu.memory_space<vmem>>, %arg8: memref<1x256xf32, #tpu.memory_space<vmem>>, %arg9: memref<1x2x16x256xf32, #tpu.memory_space<vmem>>) attributes {dimension_semantics = [#tpu.dimension_semantics<parallel>], iteration_bounds = array<i64: 2>, scalar_prefetch = 0 : i64, scratch_operands = 0 : i64, tpu.core_type = #tpu.core_type<tc>, window_params = [{transform_indices = @transform_0, window_bounds = array<i64: 1, 20, 80>}, {pipeline_mode = #tpu.pipeline_mode<synchronous>, transform_indices = @transform_1, window_bounds = array<i64: 5, 80, 128>}, {pipeline_mode = #tpu.pipeline_mode<synchronous>, transform_indices = @transform_2, window_bounds = array<i64: 1, 128>}, {pipeline_mode = #tpu.pipeline_mode<synchronous>, transform_indices = @transform_3, window_bounds = array<i64: 128, 768>}, {pipeline_mode = #tpu.pipeline_mode<synchronous>, transform_indices = @transform_4, window_bounds = array<i64: 16, 16>}, {pipeline_mode = #tpu.pipeline_mode<synchronous>, transform_indices = @transform_5, window_bounds = array<i64: 32, 16>}, {pipeline_mode = #tpu.pipeline_mode<synchronous>, transform_indices = @transform_6, window_bounds = array<i64: 80, 256>}, {pipeline_mode = #tpu.pipeline_mode<synchronous>, transform_indices = @transform_7, window_bounds = array<i64: 1, 256>}, {transform_indices = @transform_8, window_bounds = array<i64: 1, 2, 16, 256>}]} {
    %c0 = arith.constant 0 : index
    %c0_0 = arith.constant 0 : index
    %c0_1 = arith.constant 0 : index
    %0 = vector.load %arg1[%c0, %c0_0, %c0_1] : memref<1x20x80xf32, #tpu.memory_space<vmem>>, vector<1x16x80xf32>
    %1 = vector.shape_cast %0 : vector<1x16x80xf32> to vector<16x80xf32>
    %c0_2 = arith.constant 0 : index
    %c0_3 = arith.constant 0 : index
    %c0_4 = arith.constant 0 : index
    %2 = vector.load %arg2[%c0_2, %c0_3, %c0_4] : memref<5x80x128xf32, #tpu.memory_space<vmem>>, vector<1x80x128xf32>
    %3 = vector.shape_cast %2 : vector<1x80x128xf32> to vector<80x128xf32>
    %cst = arith.constant dense<0.000000e+00> : vector<16x128xf32>
    %4 = tpu.matmul %1, %3, %cst {dimension_numbers = #tpu.dot_dimension_numbers<[1], [0], [0], [1], [0, 0, 1, 1], [], []>} : vector<16x80xf32>, vector<80x128xf32>, vector<16x128xf32> -> vector<16x128xf32>
    %c0_5 = arith.constant 0 : index
    %c1 = arith.constant 1 : index
    %c0_6 = arith.constant 0 : index
    %5 = vector.load %arg1[%c0_5, %c1, %c0_6] : memref<1x20x80xf32, #tpu.memory_space<vmem>>, vector<1x16x80xf32>
    %6 = vector.shape_cast %5 : vector<1x16x80xf32> to vector<16x80xf32>
    %c1_7 = arith.constant 1 : index
    %c0_8 = arith.constant 0 : index
    %c0_9 = arith.constant 0 : index
    %7 = vector.load %arg2[%c1_7, %c0_8, %c0_9] : memref<5x80x128xf32, #tpu.memory_space<vmem>>, vector<1x80x128xf32>
    %8 = vector.shape_cast %7 : vector<1x80x128xf32> to vector<80x128xf32>
    %cst_10 = arith.constant dense<0.000000e+00> : vector<16x128xf32>
    %9 = tpu.matmul %6, %8, %cst_10 {dimension_numbers = #tpu.dot_dimension_numbers<[1], [0], [0], [1], [0, 0, 1, 1], [], []>} : vector<16x80xf32>, vector<80x128xf32>, vector<16x128xf32> -> vector<16x128xf32>
    %c0_11 = arith.constant 0 : index
    %c2 = arith.constant 2 : index
    %c0_12 = arith.constant 0 : index
    %10 = vector.load %arg1[%c0_11, %c2, %c0_12] : memref<1x20x80xf32, #tpu.memory_space<vmem>>, vector<1x16x80xf32>
    %11 = vector.shape_cast %10 : vector<1x16x80xf32> to vector<16x80xf32>
    %c2_13 = arith.constant 2 : index
    %c0_14 = arith.constant 0 : index
    %c0_15 = arith.constant 0 : index
    %12 = vector.load %arg2[%c2_13, %c0_14, %c0_15] : memref<5x80x128xf32, #tpu.memory_space<vmem>>, vector<1x80x128xf32>
    %13 = vector.shape_cast %12 : vector<1x80x128xf32> to vector<80x128xf32>
    %cst_16 = arith.constant dense<0.000000e+00> : vector<16x128xf32>
    %14 = tpu.matmul %11, %13, %cst_16 {dimension_numbers = #tpu.dot_dimension_numbers<[1], [0], [0], [1], [0, 0, 1, 1], [], []>} : vector<16x80xf32>, vector<80x128xf32>, vector<16x128xf32> -> vector<16x128xf32>
    %c0_17 = arith.constant 0 : index
    %c3 = arith.constant 3 : index
    %c0_18 = arith.constant 0 : index
    %15 = vector.load %arg1[%c0_17, %c3, %c0_18] : memref<1x20x80xf32, #tpu.memory_space<vmem>>, vector<1x16x80xf32>
    %16 = vector.shape_cast %15 : vector<1x16x80xf32> to vector<16x80xf32>
    %c3_19 = arith.constant 3 : index
    %c0_20 = arith.constant 0 : index
    %c0_21 = arith.constant 0 : index
    %17 = vector.load %arg2[%c3_19, %c0_20, %c0_21] : memref<5x80x128xf32, #tpu.memory_space<vmem>>, vector<1x80x128xf32>
    %18 = vector.shape_cast %17 : vector<1x80x128xf32> to vector<80x128xf32>
    %cst_22 = arith.constant dense<0.000000e+00> : vector<16x128xf32>
    %19 = tpu.matmul %16, %18, %cst_22 {dimension_numbers = #tpu.dot_dimension_numbers<[1], [0], [0], [1], [0, 0, 1, 1], [], []>} : vector<16x80xf32>, vector<80x128xf32>, vector<16x128xf32> -> vector<16x128xf32>
    %c0_23 = arith.constant 0 : index
    %c4 = arith.constant 4 : index
    %c0_24 = arith.constant 0 : index
    %20 = vector.load %arg1[%c0_23, %c4, %c0_24] : memref<1x20x80xf32, #tpu.memory_space<vmem>>, vector<1x16x80xf32>
    %21 = vector.shape_cast %20 : vector<1x16x80xf32> to vector<16x80xf32>
    %c4_25 = arith.constant 4 : index
    %c0_26 = arith.constant 0 : index
    %c0_27 = arith.constant 0 : index
    %22 = vector.load %arg2[%c4_25, %c0_26, %c0_27] : memref<5x80x128xf32, #tpu.memory_space<vmem>>, vector<1x80x128xf32>
    %23 = vector.shape_cast %22 : vector<1x80x128xf32> to vector<80x128xf32>
    %cst_28 = arith.constant dense<0.000000e+00> : vector<16x128xf32>
    %24 = tpu.matmul %21, %23, %cst_28 {dimension_numbers = #tpu.dot_dimension_numbers<[1], [0], [0], [1], [0, 0, 1, 1], [], []>} : vector<16x80xf32>, vector<80x128xf32>, vector<16x128xf32> -> vector<16x128xf32>
    %25 = arith.addf %4, %9 : vector<16x128xf32>
    %26 = arith.addf %14, %19 : vector<16x128xf32>
    %27 = arith.addf %25, %26 : vector<16x128xf32>
    %28 = arith.addf %27, %24 : vector<16x128xf32>
    %c0_29 = arith.constant 0 : index
    %c0_30 = arith.constant 0 : index
    %29 = vector.load %arg3[%c0_29, %c0_30] : memref<1x128xf32, #tpu.memory_space<vmem>>, vector<1x128xf32>
    %30 = vector.broadcast %29 : vector<1x128xf32> to vector<16x128xf32>
    %31 = arith.addf %28, %30 : vector<16x128xf32>
    %cst_31 = arith.constant 0.000000e+00 : f32
    %32 = vector.broadcast %cst_31 : f32 to vector<16x128xf32>
    %33 = arith.maximumf %31, %32 : vector<16x128xf32>
    %c0_32 = arith.constant 0 : index
    %c0_33 = arith.constant 0 : index
    %34 = vector.load %arg4[%c0_32, %c0_33] : memref<128x768xf32, #tpu.memory_space<vmem>>, vector<128x768xf32>
    %cst_34 = arith.constant dense<0.000000e+00> : vector<16x768xf32>
    %35 = tpu.matmul %33, %34, %cst_34 {dimension_numbers = #tpu.dot_dimension_numbers<[1], [0], [0], [1], [0, 0, 1, 1], [], []>} : vector<16x128xf32>, vector<128x768xf32>, vector<16x768xf32> -> vector<16x768xf32>
    %36 = vector.extract_strided_slice %35 {offsets = [0, 0], sizes = [16, 256], strides = [1, 1]} : vector<16x768xf32> to vector<16x256xf32>
    %37 = vector.extract_strided_slice %35 {offsets = [0, 256], sizes = [16, 256], strides = [1, 1]} : vector<16x768xf32> to vector<16x256xf32>
    %c0_35 = arith.constant 0 : index
    %c0_36 = arith.constant 0 : index
    %38 = vector.load %arg5[%c0_35, %c0_36] : memref<16x16xf32, #tpu.memory_space<vmem>>, vector<16x16xf32>
    %39 = vector.extract_strided_slice %35 {offsets = [0, 512], sizes = [16, 256], strides = [1, 1]} : vector<16x768xf32> to vector<16x256xf32>
    %cst_37 = arith.constant dense<0.000000e+00> : vector<16x256xf32>
    %40 = tpu.matmul %38, %39, %cst_37 {dimension_numbers = #tpu.dot_dimension_numbers<[1], [0], [0], [1], [0, 0, 1, 1], [], []>} : vector<16x16xf32>, vector<16x256xf32>, vector<16x256xf32> -> vector<16x256xf32>
    %41 = arith.addf %37, %40 : vector<16x256xf32>
    %c0_38 = arith.constant 0 : index
    %c2_39 = arith.constant 2 : index
    %c0_40 = arith.constant 0 : index
    %42 = vector.load %arg1[%c0_38, %c2_39, %c0_40] : memref<1x20x80xf32, #tpu.memory_space<vmem>>, vector<1x16x80xf32>
    %43 = vector.shape_cast %42 : vector<1x16x80xf32> to vector<16x80xf32>
    %c0_41 = arith.constant 0 : index
    %c0_42 = arith.constant 0 : index
    %44 = vector.load %arg7[%c0_41, %c0_42] : memref<80x256xf32, #tpu.memory_space<vmem>>, vector<80x256xf32>
    %cst_43 = arith.constant dense<0.000000e+00> : vector<16x256xf32>
    %45 = tpu.matmul %43, %44, %cst_43 {dimension_numbers = #tpu.dot_dimension_numbers<[1], [0], [0], [1], [0, 0, 1, 1], [], []>} : vector<16x80xf32>, vector<80x256xf32>, vector<16x256xf32> -> vector<16x256xf32>
    %c0_44 = arith.constant 0 : index
    %c0_45 = arith.constant 0 : index
    %46 = vector.load %arg6[%c0_44, %c0_45] : memref<32x16xf32, #tpu.memory_space<vmem>>, vector<32x16xf32>
    %cst_46 = arith.constant dense<0.000000e+00> : vector<32x256xf32>
    %47 = tpu.matmul %46, %45, %cst_46 {dimension_numbers = #tpu.dot_dimension_numbers<[1], [0], [0], [1], [0, 0, 1, 1], [], []>} : vector<32x16xf32>, vector<16x256xf32>, vector<32x256xf32> -> vector<32x256xf32>
    %c0_47 = arith.constant 0 : index
    %c0_48 = arith.constant 0 : index
    %48 = vector.load %arg8[%c0_47, %c0_48] : memref<1x256xf32, #tpu.memory_space<vmem>>, vector<1x256xf32>
    %49 = vector.extract_strided_slice %47 {offsets = [0, 0], sizes = [16, 256], strides = [1, 1]} : vector<32x256xf32> to vector<16x256xf32>
    %50 = arith.addf %36, %49 : vector<16x256xf32>
    %51 = vector.broadcast %48 : vector<1x256xf32> to vector<16x256xf32>
    %52 = arith.addf %50, %51 : vector<16x256xf32>
    %cst_49 = arith.constant 0.000000e+00 : f32
    %53 = vector.broadcast %cst_49 : f32 to vector<16x256xf32>
    %54 = arith.maximumf %52, %53 : vector<16x256xf32>
    %c0_50 = arith.constant 0 : index
    %c0_51 = arith.constant 0 : index
    %c0_52 = arith.constant 0 : index
    %c0_53 = arith.constant 0 : index
    %55 = vector.load %arg9[%c0_50, %c0_51, %c0_52, %c0_53] : memref<1x2x16x256xf32, #tpu.memory_space<vmem>>, vector<1x1x16x256xf32>
    %56 = vector.shape_cast %55 : vector<1x1x16x256xf32> to vector<16x256xf32>
    %57 = vector.shape_cast %54 : vector<16x256xf32> to vector<1x1x16x256xf32>
    tpu.vector_store %arg9[%c0_50, %c0_51, %c0_52, %c0_53], %57 {strides = array<i32>} : memref<1x2x16x256xf32, #tpu.memory_space<vmem>>, vector<1x1x16x256xf32>,
    %58 = vector.extract_strided_slice %47 {offsets = [16, 0], sizes = [16, 256], strides = [1, 1]} : vector<32x256xf32> to vector<16x256xf32>
    %59 = arith.addf %41, %58 : vector<16x256xf32>
    %60 = vector.broadcast %48 : vector<1x256xf32> to vector<16x256xf32>
    %61 = arith.addf %59, %60 : vector<16x256xf32>
    %cst_54 = arith.constant 0.000000e+00 : f32
    %62 = vector.broadcast %cst_54 : f32 to vector<16x256xf32>
    %63 = arith.maximumf %61, %62 : vector<16x256xf32>
    %c0_55 = arith.constant 0 : index
    %c1_56 = arith.constant 1 : index
    %c0_57 = arith.constant 0 : index
    %c0_58 = arith.constant 0 : index
    %64 = vector.load %arg9[%c0_55, %c1_56, %c0_57, %c0_58] : memref<1x2x16x256xf32, #tpu.memory_space<vmem>>, vector<1x1x16x256xf32>
    %65 = vector.shape_cast %64 : vector<1x1x16x256xf32> to vector<16x256xf32>
    %66 = vector.shape_cast %63 : vector<16x256xf32> to vector<1x1x16x256xf32>
    tpu.vector_store %arg9[%c0_55, %c1_56, %c0_57, %c0_58], %66 {strides = array<i32>} : memref<1x2x16x256xf32, #tpu.memory_space<vmem>>, vector<1x1x16x256xf32>,
    return
  }
  func.func @transform_0(%arg0: i32) -> (i32, i32, i32) {
    %c0_i32 = arith.constant 0 : i32
    %c0_i32_0 = arith.constant 0 : i32
    %c0_i32_1 = arith.constant 0 : i32
    return %arg0, %c0_i32, %c0_i32_0 : i32, i32, i32
  }
  func.func @transform_1(%arg0: i32) -> (i32, i32, i32) {
    %c0_i32 = arith.constant 0 : i32
    %c0_i32_0 = arith.constant 0 : i32
    %c0_i32_1 = arith.constant 0 : i32
    %c0_i32_2 = arith.constant 0 : i32
    return %c0_i32, %c0_i32_0, %c0_i32_1 : i32, i32, i32
  }
  func.func @transform_2(%arg0: i32) -> (i32, i32) {
    %c0_i32 = arith.constant 0 : i32
    %c0_i32_0 = arith.constant 0 : i32
    %c0_i32_1 = arith.constant 0 : i32
    return %c0_i32, %c0_i32_0 : i32, i32
  }
  func.func @transform_3(%arg0: i32) -> (i32, i32) {
    %c0_i32 = arith.constant 0 : i32
    %c0_i32_0 = arith.constant 0 : i32
    %c0_i32_1 = arith.constant 0 : i32
    return %c0_i32, %c0_i32_0 : i32, i32
  }
  func.func @transform_4(%arg0: i32) -> (i32, i32) {
    %c0_i32 = arith.constant 0 : i32
    %c0_i32_0 = arith.constant 0 : i32
    %c0_i32_1 = arith.constant 0 : i32
    return %c0_i32, %c0_i32_0 : i32, i32
  }
  func.func @transform_5(%arg0: i32) -> (i32, i32) {
    %c0_i32 = arith.constant 0 : i32
    %c0_i32_0 = arith.constant 0 : i32
    %c0_i32_1 = arith.constant 0 : i32
    return %c0_i32, %c0_i32_0 : i32, i32
  }
  func.func @transform_6(%arg0: i32) -> (i32, i32) {
    %c0_i32 = arith.constant 0 : i32
    %c0_i32_0 = arith.constant 0 : i32
    %c0_i32_1 = arith.constant 0 : i32
    return %c0_i32, %c0_i32_0 : i32, i32
  }
  func.func @transform_7(%arg0: i32) -> (i32, i32) {
    %c0_i32 = arith.constant 0 : i32
    %c0_i32_0 = arith.constant 0 : i32
    %c0_i32_1 = arith.constant 0 : i32
    return %c0_i32, %c0_i32_0 : i32, i32
  }
  func.func @transform_8(%arg0: i32) -> (i32, i32, i32, i32) {
    %c0_i32 = arith.constant 0 : i32
    %c0_i32_0 = arith.constant 0 : i32
    %c0_i32_1 = arith.constant 0 : i32
    %c0_i32_2 = arith.constant 0 : i32
    return %arg0, %c0_i32, %c0_i32_0, %c0_i32_1 : i32, i32, i32, i32
  }
}

</mosaic_0001>

<llo_original>
// kernel: residual_up_projection.1
$region0: #{residual_up_projection.1}
  #allocation0 [shape = 'u32[]', space=smem, size = 0x4, offset = 0x4, fixed_abs, tag = 'smem constant byte address 0x4 - core index']
  #allocation1 [shape = 'u32[72,128]{1,0:T(1,128)}', space=vmem, size = 0x9000, scoped, tag = 'internal scratch']
  %s0 = inlined_call_operand.vmem [shape: f32[2,20,80], index: 0, kind: input, shape index: {}]
  %s1 = inlined_call_operand.hbm [shape: f32[5,80,128], index: 1, kind: input, shape index: {}]
  %s2 = inlined_call_operand.vmem [shape: f32[1,128], index: 2, kind: input, shape index: {}]
  %s3 = inlined_call_operand.vmem [shape: f32[128,768], index: 3, kind: input, shape index: {}]
  %s4 = inlined_call_operand.vmem [shape: f32[16,16], index: 4, kind: input, shape index: {}]
  %s5 = inlined_call_operand.vmem [shape: f32[32,16], index: 5, kind: input, shape index: {}]
  %s6 = inlined_call_operand.hbm [shape: f32[80,256], index: 6, kind: input, shape index: {}]
  %s7 = inlined_call_operand.vmem [shape: f32[1,256], index: 7, kind: input, shape index: {}]
  %s8 = inlined_call_operand.vmem [shape: f32[2,2,16,256], index: 8, kind: output, shape index: {}]
  %s9 = sld [smem:[#allocation0]]
  $region73: #{residual_up_projection.1} parent=0
    _
  %s11 = ssub.s32 1, %s9
  %s12 = scalar_select 0, %s11, %s9
  $region1: #{residual_up_projection.1} parent=0
    #allocation2 [shape = 'u8[204800]{0}', space=vmem, size = 0x32000, scoped, tag = 'input window, operand 1, single buffered']
    #allocation3 [shape = 's32[2]{0}', space=sflag, size = 0x8, scoped, tag = 'scoped memory for residual_up_projection.1']
    #allocation4 [shape = 'u8[81920]{0}', space=vmem, size = 0x14000, scoped, tag = 'input window, operand 6, single buffered']
    #allocation5 [shape = 's32[1]{0}', space=sflag, size = 0x4, scoped, tag = 'scoped memory for residual_up_projection.1']
    %13 = vsyncpa [#allocation3], 0
    %14 = vsyncpa [#allocation5], 0
    loop: start=0, step=1, limit=4
    $region2: #{residual_up_projection.1} parent=1 // loop_pre_header
      _
    $region3: #{residual_up_projection.1} parent=1 // loop_header
      %s16 = sphi 0, %s20
      %p17 = scmp.ge.s32.totalorder %s16, 4
      %s26 = sphi 0, %s28
      %s29 = sphi 0, %s26
      %s30 = sphi 0, %s29
      %s46 = sphi 0, %s30
      %s50 = sphi 0, %s50
      %s52 = sphi 0, %s50
      %s53 = sphi 0, %s52
      %s67 = sphi 0, %s53
      %s71 = sphi 0, %s71
      %s73 = sphi 0, %s71
      %s74 = sphi 0, %s73
      %s88 = sphi 0, %s74
      %s92 = sphi 0, %s92
      %s94 = sphi 0, %s92
      %s95 = sphi 0, %s94
      %s109 = sphi 0, %s95
      %s113 = sphi 0, %s113
      %s115 = sphi 0, %s113
      %s116 = sphi 0, %s115
      %s130 = sphi 0, %s116
      %s134 = sphi 0, %s134
      %s136 = sphi 0, %s134
      %s137 = sphi 0, %s136
      %s151 = sphi 0, %s137
      %s155 = sphi 0, %s155
      %s157 = sphi 0, %s155
      %s158 = sphi 0, %s157
      %s172 = sphi 0, %s158
      %s176 = sphi 0, %s176
      %s178 = sphi 0, %s176
      %s179 = sphi 0, %s178
      %s193 = sphi 0, %s179
      %s199 = sphi 0, %s201
      %s202 = sphi 0, %s199
      %s203 = sphi 0, %s202
      %s219 = sphi 0, %s203
    $region4: #{residual_up_projection.1} parent=1 // loop_header_branch
      %19 = sbr.rel (%p17) target = $region8
    $region5: #{residual_up_projection.1} parent=1 // loop_body
      %s21 = ssub.s32 %s16, 1
      %s22 = ssub.s32 %s16, 2
      %s23 = sadd.s32 %s16, 1
      %s24 = ssub.s32 %s16, %s23
      %p25 = scmp.eq.s32.totalorder %s24, 0
      %s27 = sadd.s32 %s26, 1
      %s28 = scalar_select %p25, %s26, %s27
      %p31 = pneg %p25
      %p32 = scmp.eq.s32.totalorder %s16, 1
      %p33 = por %p31, %p32
      %p34 = scmp.ne.s32.totalorder %s26, %s29
      %p35 = scmp.eq.s32.totalorder %s16, 0
      %p36 = por %p34, %p35
      %p37 = scmp.ne.s32.totalorder %s26, %s29
      %p38 = scmp.eq.s32.totalorder %s21, 1
      %p39 = por %p37, %p38
      %p40 = scmp.ne.s32.totalorder %s29, %s30
      %p41 = scmp.eq.s32.totalorder %s21, 0
      %p42 = por %p40, %p41
      %p43 = scmp.ne.s32.totalorder %s29, %s30
      %p44 = scmp.eq.s32.totalorder %s22, 1
      %p45 = por %p43, %p44
      %p47 = scmp.ne.s32.totalorder %s30, %s46
      %p48 = scmp.eq.s32.totalorder %s22, 0
      %p49 = por %p47, %p48
      %s51 = sadd.s32 %s50, 1
      %p54 = scmp.eq.s32.totalorder %s16, 1
      %p55 = scmp.ne.s32.totalorder %s50, %s52
      %p56 = scmp.eq.s32.totalorder %s16, 0
      %p57 = por %p55, %p56
      %p58 = scmp.ne.s32.totalorder %s50, %s52
      %p59 = scmp.eq.s32.totalorder %s21, 1
      %p60 = por %p58, %p59
      %p61 = scmp.ne.s32.totalorder %s52, %s53
      %p62 = scmp.eq.s32.totalorder %s21, 0
      %p63 = por %p61, %p62
      %p64 = scmp.ne.s32.totalorder %s52, %s53
      %p65 = scmp.eq.s32.totalorder %s22, 1
      %p66 = por %p64, %p65
      %p68 = scmp.ne.s32.totalorder %s53, %s67
      %p69 = scmp.eq.s32.totalorder %s22, 0
      %p70 = por %p68, %p69
      %s72 = sadd.s32 %s71, 1
      %p75 = scmp.eq.s32.totalorder %s16, 1
      %p76 = scmp.ne.s32.totalorder %s71, %s73
      %p77 = scmp.eq.s32.totalorder %s16, 0
      %p78 = por %p76, %p77
      %p79 = scmp.ne.s32.totalorder %s71, %s73
      %p80 = scmp.eq.s32.totalorder %s21, 1
      %p81 = por %p79, %p80
      %p82 = scmp.ne.s32.totalorder %s73, %s74
      %p83 = scmp.eq.s32.totalorder %s21, 0
      %p84 = por %p82, %p83
      %p85 = scmp.ne.s32.totalorder %s73, %s74
      %p86 = scmp.eq.s32.totalorder %s22, 1
      %p87 = por %p85, %p86
      %p89 = scmp.ne.s32.totalorder %s74, %s88
      %p90 = scmp.eq.s32.totalorder %s22, 0
      %p91 = por %p89, %p90
      %s93 = sadd.s32 %s92, 1
      %p96 = scmp.eq.s32.totalorder %s16, 1
      %p97 = scmp.ne.s32.totalorder %s92, %s94
      %p98 = scmp.eq.s32.totalorder %s16, 0
      %p99 = por %p97, %p98
      %p100 = scmp.ne.s32.totalorder %s92, %s94
      %p101 = scmp.eq.s32.totalorder %s21, 1
      %p102 = por %p100, %p101
      %p103 = scmp.ne.s32.totalorder %s94, %s95
      %p104 = scmp.eq.s32.totalorder %s21, 0
      %p105 = por %p103, %p104
      %p106 = scmp.ne.s32.totalorder %s94, %s95
      %p107 = scmp.eq.s32.totalorder %s22, 1
      %p108 = por %p106, %p107
      %p110 = scmp.ne.s32.totalorder %s95, %s109
      %p111 = scmp.eq.s32.totalorder %s22, 0
      %p112 = por %p110, %p111
      %s114 = sadd.s32 %s113, 1
      %p117 = scmp.eq.s32.totalorder %s16, 1
      %p118 = scmp.ne.s32.totalorder %s113, %s115
      %p119 = scmp.eq.s32.totalorder %s16, 0
      %p120 = por %p118, %p119
      %p121 = scmp.ne.s32.totalorder %s113, %s115
      %p122 = scmp.eq.s32.totalorder %s21, 1
      %p123 = por %p121, %p122
      %p124 = scmp.ne.s32.totalorder %s115, %s116
      %p125 = scmp.eq.s32.totalorder %s21, 0
      %p126 = por %p124, %p125
      %p127 = scmp.ne.s32.totalorder %s115, %s116
      %p128 = scmp.eq.s32.totalorder %s22, 1
      %p129 = por %p127, %p128
      %p131 = scmp.ne.s32.totalorder %s116, %s130
      %p132 = scmp.eq.s32.totalorder %s22, 0
      %p133 = por %p131, %p132
      %s135 = sadd.s32 %s134, 1
      %p138 = scmp.eq.s32.totalorder %s16, 1
      %p139 = scmp.ne.s32.totalorder %s134, %s136
      %p140 = scmp.eq.s32.totalorder %s16, 0
      %p141 = por %p139, %p140
      %p142 = scmp.ne.s32.totalorder %s134, %s136
      %p143 = scmp.eq.s32.totalorder %s21, 1
      %p144 = por %p142, %p143
      %p145 = scmp.ne.s32.totalorder %s136, %s137
      %p146 = scmp.eq.s32.totalorder %s21, 0
      %p147 = por %p145, %p146
      %p148 = scmp.ne.s32.totalorder %s136, %s137
      %p149 = scmp.eq.s32.totalorder %s22, 1
      %p150 = por %p148, %p149
      %p152 = scmp.ne.s32.totalorder %s137, %s151
      %p153 = scmp.eq.s32.totalorder %s22, 0
      %p154 = por %p152, %p153
      %s156 = sadd.s32 %s155, 1
      %p159 = scmp.eq.s32.totalorder %s16, 1
      %p160 = scmp.ne.s32.totalorder %s155, %s157
      %p161 = scmp.eq.s32.totalorder %s16, 0
      %p162 = por %p160, %p161
      %p163 = scmp.ne.s32.totalorder %s155, %s157
      %p164 = scmp.eq.s32.totalorder %s21, 1
      %p165 = por %p163, %p164
      %p166 = scmp.ne.s32.totalorder %s157, %s158
      %p167 = scmp.eq.s32.totalorder %s21, 0
      %p168 = por %p166, %p167
      %p169 = scmp.ne.s32.totalorder %s157, %s158
      %p170 = scmp.eq.s32.totalorder %s22, 1
      %p171 = por %p169, %p170
      %p173 = scmp.ne.s32.totalorder %s158, %s172
      %p174 = scmp.eq.s32.totalorder %s22, 0
      %p175 = por %p173, %p174
      %s177 = sadd.s32 %s176, 1
      %p180 = scmp.eq.s32.totalorder %s16, 1
      %p181 = scmp.ne.s32.totalorder %s176, %s178
      %p182 = scmp.eq.s32.totalorder %s16, 0
      %p183 = por %p181, %p182
      %p184 = scmp.ne.s32.totalorder %s176, %s178
      %p185 = scmp.eq.s32.totalorder %s21, 1
      %p186 = por %p184, %p185
      %p187 = scmp.ne.s32.totalorder %s178, %s179
      %p188 = scmp.eq.s32.totalorder %s21, 0
      %p189 = por %p187, %p188
      %p190 = scmp.ne.s32.totalorder %s178, %s179
      %p191 = scmp.eq.s32.totalorder %s22, 1
      %p192 = por %p190, %p191
      %p194 = scmp.ne.s32.totalorder %s179, %s193
      %p195 = scmp.eq.s32.totalorder %s22, 0
      %p196 = por %p194, %p195
      %s197 = ssub.s32 %s16, %s23
      %p198 = scmp.eq.s32.totalorder %s197, 0
      %s200 = sadd.s32 %s199, 1
      %s201 = scalar_select %p198, %s199, %s200
      %p204 = pneg %p198
      %p205 = scmp.eq.s32.totalorder %s16, 1
      %p206 = por %p204, %p205
      %p207 = scmp.ne.s32.totalorder %s199, %s202
      %p208 = scmp.eq.s32.totalorder %s16, 0
      %p209 = por %p207, %p208
      %p210 = scmp.ne.s32.totalorder %s199, %s202
      %p211 = scmp.eq.s32.totalorder %s21, 1
      %p212 = por %p210, %p211
      %p213 = scmp.ne.s32.totalorder %s202, %s203
      %p214 = scmp.eq.s32.totalorder %s21, 0
      %p215 = por %p213, %p214
      %p216 = scmp.ne.s32.totalorder %s202, %s203
      %p217 = scmp.eq.s32.totalorder %s22, 1
      %p218 = por %p216, %p217
      %p220 = scmp.ne.s32.totalorder %s203, %s219
      %p221 = scmp.eq.s32.totalorder %s22, 0
      %p222 = por %p220, %p221
      %p223 = scmp.le.s32.totalorder 1, %s16
      %p224 = scmp.lt.s32.totalorder %s16, 3
      %p225 = pnand %p223, %p224
      %p226 = pneg %p225
      // Predicated region
      $region9: #{residual_up_projection.1} parent=5 // pred_check
        _
      $region10: #{residual_up_projection.1} parent=5 // pred_check_branch
        %228 = sbr.rel (%p225) target = $region12
      $region11: #{residual_up_projection.1} parent=5 // pred_region
        %s229 = ssub.s32 %s16, 1
        // Predicated region
        $region13: #{residual_up_projection.1} parent=11 // pred_check
          %p230 = pneg %p63
        $region14: #{residual_up_projection.1} parent=11 // pred_check_branch
          %232 = sbr.rel (%p230) target = $region16
        $region15: #{residual_up_projection.1} parent=11 // pred_region
          %234 = vsyncadd [#allocation3], 0
          %s235 = sshll.u32 %s1, 4
          %s236 = int_to_ptr.hbm [resolvable:$true] %s235
          %s237 = sshll.u32 [#allocation2], 4
          %s238 = int_to_ptr.vmem [resolvable:$true] %s237
          %243 = dma.hbm_to_vmem [thread:$0]  %s236, 6400, %s238, [#allocation3], 128, 128, 8
        $region16: #{residual_up_projection.1} parent=11 // pred_fallthru
          _
        // Predicated region
        $region17: #{residual_up_projection.1} parent=11 // pred_check
          %p244 = pneg %p84
        $region18: #{residual_up_projection.1} parent=11 // pred_check_branch
          %246 = sbr.rel (%p244) target = $region20
        $region19: #{residual_up_projection.1} parent=11 // pred_region
          _
        $region20: #{residual_up_projection.1} parent=11 // pred_fallthru
          _
        // Predicated region
        $region21: #{residual_up_projection.1} parent=11 // pred_check
          %p247 = pneg %p105
        $region22: #{residual_up_projection.1} parent=11 // pred_check_branch
          %249 = sbr.rel (%p247) target = $region24
        $region23: #{residual_up_projection.1} parent=11 // pred_region
          _
        $region24: #{residual_up_projection.1} parent=11 // pred_fallthru
          _
        // Predicated region
        $region25: #{residual_up_projection.1} parent=11 // pred_check
          %p250 = pneg %p126
        $region26: #{residual_up_projection.1} parent=11 // pred_check_branch
          %252 = sbr.rel (%p250) target = $region28
        $region27: #{residual_up_projection.1} parent=11 // pred_region
          _
        $region28: #{residual_up_projection.1} parent=11 // pred_fallthru
          _
        // Predicated region
        $region29: #{residual_up_projection.1} parent=11 // pred_check
          %p253 = pneg %p147
        $region30: #{residual_up_projection.1} parent=11 // pred_check_branch
          %255 = sbr.rel (%p253) target = $region32
        $region31: #{residual_up_projection.1} parent=11 // pred_region
          _
        $region32: #{residual_up_projection.1} parent=11 // pred_fallthru
          _
        // Predicated region
        $region33: #{residual_up_projection.1} parent=11 // pred_check
          %p256 = pneg %p168
        $region34: #{residual_up_projection.1} parent=11 // pred_check_branch
          %258 = sbr.rel (%p256) target = $region36
        $region35: #{residual_up_projection.1} parent=11 // pred_region
          %260 = vsyncadd [#allocation5], 0
          %s261 = sshll.u32 %s6, 4
          %s262 = int_to_ptr.hbm [resolvable:$true] %s261
          %s263 = sshll.u32 [#allocation4], 4
          %s264 = int_to_ptr.vmem [resolvable:$true] %s263
          %269 = dma.hbm_to_vmem [thread:$0]  %s262, 2560, %s264, [#allocation5], 256, 256, 16
        $region36: #{residual_up_projection.1} parent=11 // pred_fallthru
          _
        // Predicated region
        $region37: #{residual_up_projection.1} parent=11 // pred_check
          %p270 = pneg %p189
        $region38: #{residual_up_projection.1} parent=11 // pred_check_branch
          %272 = sbr.rel (%p270) target = $region40
        $region39: #{residual_up_projection.1} parent=11 // pred_region
          _
        $region40: #{residual_up_projection.1} parent=11 // pred_fallthru
          _
      $region12: #{residual_up_projection.1} parent=5 // pred_fallthru
        _
      %p273 = scmp.lt.s32.totalorder %s16, 2
      // Predicated region
      $region41: #{residual_up_projection.1} parent=5 // pred_check
        %p274 = pneg %p273
      $region42: #{residual_up_projection.1} parent=5 // pred_check_branch
        %276 = sbr.rel (%p274) target = $region44
      $region43: #{residual_up_projection.1} parent=5 // pred_region
        // Predicated region
        $region45: #{residual_up_projection.1} parent=43 // pred_check
          %p277 = pneg %p36
        $region46: #{residual_up_projection.1} parent=43 // pred_check_branch
          %279 = sbr.rel (%p277) target = $region48
        $region47: #{residual_up_projection.1} parent=43 // pred_region
          %p280 = scmp.lt.s32.totalorder %s16, 1
          %s281 = scalar_select %p280, %s16, 1
          %s282 = smul.addr %s281, 3
          %s283 = smul.addr %s282, 8
          %s284 = scalar_lea.vmem %s0, %s283
        $region48: #{residual_up_projection.1} parent=43 // pred_fallthru
          _
      $region44: #{residual_up_projection.1} parent=5 // pred_fallthru
        _
      %p285 = scmp.le.s32.totalorder 1, %s16
      %p286 = scmp.lt.s32.totalorder %s16, 3
      %p287 = pnand %p285, %p286
      %p288 = pneg %p287
      // Predicated region
      $region49: #{residual_up_projection.1} parent=5 // pred_check
        _
      $region50: #{residual_up_projection.1} parent=5 // pred_check_branch
        %290 = sbr.rel (%p287) target = $region52
      $region51: #{residual_up_projection.1} parent=5 // pred_region
        %s291 = ssub.s32 %s16, 1
        // Predicated region
        $region53: #{residual_up_projection.1} parent=51 // pred_check
          %p292 = pneg %p63
        $region54: #{residual_up_projection.1} parent=51 // pred_check_branch
          %294 = sbr.rel (%p292) target = $region56
        $region55: #{residual_up_projection.1} parent=51 // pred_region
          %296 = dma.done [#allocation3], 6400
        $region56: #{residual_up_projection.1} parent=51 // pred_fallthru
          _
        // Predicated region
        $region57: #{residual_up_projection.1} parent=51 // pred_check
          %p297 = pneg %p168
        $region58: #{residual_up_projection.1} parent=51 // pred_check_branch
          %299 = sbr.rel (%p297) target = $region60
        $region59: #{residual_up_projection.1} parent=51 // pred_region
          %301 = dma.done [#allocation5], 2560
        $region60: #{residual_up_projection.1} parent=51 // pred_fallthru
          _
        %p302 = scmp.lt.s32.totalorder %s21, 1
        %s303 = scalar_select %p302, %s21, 1
        %s304 = smul.addr %s303, 3
        %s305 = smul.addr %s304, 8
        %s306 = scalar_lea.vmem %s0, %s305
        %p307 = pneg %p42
        %p308 = pneg %p39
        %p309 = pneg %p63
        %p310 = pneg %p60
        %p311 = pneg %p84
        %p312 = pneg %p81
        %p313 = pneg %p105
        %p314 = pneg %p102
        %p315 = pneg %p126
        %p316 = pneg %p123
        %p317 = pneg %p147
        %p318 = pneg %p144
        %p319 = pneg %p168
        %p320 = pneg %p165
        %p321 = pneg %p189
        %p322 = pneg %p186
        %p323 = pneg %p215
        %p324 = pneg %p212
        %p325 = scmp.lt.s32.totalorder %s21, 1
        %s326 = scalar_select %p325, %s21, 1
        %s327 = smul.addr %s326, 8
        %s328 = smul.addr %s327, 8
        %s329 = scalar_lea.vmem %s8, %s328
        %p330 = scmp.lt.s32.totalorder %s21, 1
        %s331 = scalar_select %p330, %s21, 1
        %s332 = smul.addr %s331, 3
        %s333 = smul.addr %s332, 8
        %s334 = scalar_lea.vmem %s0, %s333
        %p335 = scmp.lt.s32.totalorder %s21, 1
        %s336 = scalar_select %p335, %s21, 1
        %s337 = smul.addr %s336, 8
        %s338 = smul.addr %s337, 8
        %s339 = scalar_lea.vmem %s8, %s338
        %v340 = vld [vmem:[%s334] sm:$0xff]
        %v341 = vld [vmem:[%s334 + $0x8] sm:$0xff]
        %v342 = vld [vmem:[#allocation2] sm:$0xff]
        %v343 = vld [vmem:[#allocation2 + $0x8] sm:$0xff]
        %v344 = vld [vmem:[#allocation2 + $0x10] sm:$0xff]
        %v345 = vld [vmem:[#allocation2 + $0x18] sm:$0xff]
        %v346 = vld [vmem:[#allocation2 + $0x20] sm:$0xff]
        %v347 = vld [vmem:[#allocation2 + $0x28] sm:$0xff]
        %v348 = vld [vmem:[#allocation2 + $0x30] sm:$0xff]
        %v349 = vld [vmem:[#allocation2 + $0x38] sm:$0xff]
        %v350 = vld [vmem:[#allocation2 + $0x40] sm:$0xff]
        %v351 = vld [vmem:[#allocation2 + $0x48] sm:$0xff]
        %v352 = vld [vmem:[%s334 + $0x1] sm:$0xff]
        %v353 = vld [vmem:[%s334 + $0x9] sm:$0xff]
        %s354 = scalar_lea.vmem [#allocation2], 80
        %v355 = vld [vmem:[%s354] sm:$0xff]
        %v356 = vld [vmem:[%s354 + $0x8] sm:$0xff]
        %v357 = vld [vmem:[%s354 + $0x10] sm:$0xff]
        %v358 = vld [vmem:[%s354 + $0x18] sm:$0xff]
        %v359 = vld [vmem:[%s354 + $0x20] sm:$0xff]
        %v360 = vld [vmem:[%s354 + $0x28] sm:$0xff]
        %v361 = vld [vmem:[%s354 + $0x30] sm:$0xff]
        %v362 = vld [vmem:[%s354 + $0x38] sm:$0xff]
        %v363 = vld [vmem:[%s354 + $0x40] sm:$0xff]
        %v364 = vld [vmem:[%s354 + $0x48] sm:$0xff]
        %vm365 = vcmask 654336
        %v367 = vsel %vm365, %v352, 0
        %v370 = vsel %vm365, %v353, 0
        %372 = vmatpush.msra.mxu0 0.0
        %373 = vmatpush.msra.mxu0 0.0
        %374 = vmatpush.msra.mxu0 0.0
        %375 = vmatpush.msra.mxu0 0.0
        %376 = vmatpush.msra.mxu0 0.0
        %377 = vmatpush.msra.mxu0 0.0
        %378 = vmatpush.msra.mxu0 %v364
        %379 = vmatpush.msra.mxu0 %v363
        %380 = vmatpush.msra.mxu0 %v362
        %381 = vmatpush.msra.mxu0 %v361
        %382 = vmatpush.msra.mxu0 %v360
        %383 = vmatpush.msra.mxu0 %v359
        %384 = vmatpush.msra.mxu0 %v358
        %385 = vmatpush.msra.mxu0 %v357
        %386 = vmatpush.msra.mxu0 %v356
        %387 = vmatpush.msra.mxu0 %v355
        %388 = vmatmul.f32.gmra.mxu0 %v367
        %v389 = vpop.f32.mrf.mxu0
        %v390 = vadd.f32 0.0, %v389
        %391 = vmatmul.f32.gmra.mxu0 %v370
        %v392 = vpop.f32.mrf.mxu0
        %v393 = vadd.f32 0.0, %v392
        %394 = vdwg.mxu0
        %v395 = vld [vmem:[%s334 + $0x2] sm:$0xff]
        %v396 = vld [vmem:[%s334 + $0xa] sm:$0xff]
        %s397 = scalar_lea.vmem [#allocation2], 160
        %v398 = vld [vmem:[%s397] sm:$0xff]
        %v399 = vld [vmem:[%s397 + $0x8] sm:$0xff]
        %v400 = vld [vmem:[%s397 + $0x10] sm:$0xff]
        %v401 = vld [vmem:[%s397 + $0x18] sm:$0xff]
        %v402 = vld [vmem:[%s397 + $0x20] sm:$0xff]
        %v403 = vld [vmem:[%s397 + $0x28] sm:$0xff]
        %v404 = vld [vmem:[%s397 + $0x30] sm:$0xff]
        %v405 = vld [vmem:[%s397 + $0x38] sm:$0xff]
        %v406 = vld [vmem:[%s397 + $0x40] sm:$0xff]
        %v407 = vld [vmem:[%s397 + $0x48] sm:$0xff]
        %v408 = vld [vmem:[%s334 + $0x3] sm:$0xff]
        %v409 = vld [vmem:[%s334 + $0xb] sm:$0xff]
        %s410 = scalar_lea.vmem [#allocation2], 240
        %v411 = vld [vmem:[%s410] sm:$0xff]
        %v412 = vld [vmem:[%s410 + $0x8] sm:$0xff]
        %v413 = vld [vmem:[%s410 + $0x10] sm:$0xff]
        %v414 = vld [vmem:[%s410 + $0x18] sm:$0xff]
        %v415 = vld [vmem:[%s410 + $0x20] sm:$0xff]
        %v416 = vld [vmem:[%s410 + $0x28] sm:$0xff]
        %v417 = vld [vmem:[%s410 + $0x30] sm:$0xff]
        %v418 = vld [vmem:[%s410 + $0x38] sm:$0xff]
        %v419 = vld [vmem:[%s410 + $0x40] sm:$0xff]
        %v420 = vld [vmem:[%s410 + $0x48] sm:$0xff]
        %v422 = vsel %vm365, %v408, 0
        %v425 = vsel %vm365, %v409, 0
        %427 = vmatpush.msra.mxu0 0.0
        %428 = vmatpush.msra.mxu0 0.0
        %429 = vmatpush.msra.mxu0 0.0
        %430 = vmatpush.msra.mxu0 0.0
        %431 = vmatpush.msra.mxu0 0.0
        %432 = vmatpush.msra.mxu0 0.0
        %433 = vmatpush.msra.mxu0 %v420
        %434 = vmatpush.msra.mxu0 %v419
        %435 = vmatpush.msra.mxu0 %v418
        %436 = vmatpush.msra.mxu0 %v417
        %437 = vmatpush.msra.mxu0 %v416
        %438 = vmatpush.msra.mxu0 %v415
        %439 = vmatpush.msra.mxu0 %v414
        %440 = vmatpush.msra.mxu0 %v413
        %441 = vmatpush.msra.mxu0 %v412
        %442 = vmatpush.msra.mxu0 %v411
        %443 = vmatmul.f32.gmra.mxu0 %v422
        %v444 = vpop.f32.mrf.mxu0
        %v445 = vadd.f32 0.0, %v444
        %446 = vmatmul.f32.gmra.mxu0 %v425
        %v447 = vpop.f32.mrf.mxu0
        %v448 = vadd.f32 0.0, %v447
        %449 = vdwg.mxu0
        %v450 = vld [vmem:[%s334 + $0x4] sm:$0xff]
        %v451 = vld [vmem:[%s334 + $0xc] sm:$0xff]
        %s452 = scalar_lea.vmem [#allocation2], 320
        %v453 = vld [vmem:[%s452] sm:$0xff]
        %v454 = vld [vmem:[%s452 + $0x8] sm:$0xff]
        %v455 = vld [vmem:[%s452 + $0x10] sm:$0xff]
        %v456 = vld [vmem:[%s452 + $0x18] sm:$0xff]
        %v457 = vld [vmem:[%s452 + $0x20] sm:$0xff]
        %v458 = vld [vmem:[%s452 + $0x28] sm:$0xff]
        %v459 = vld [vmem:[%s452 + $0x30] sm:$0xff]
        %v460 = vld [vmem:[%s452 + $0x38] sm:$0xff]
        %v461 = vld [vmem:[%s452 + $0x40] sm:$0xff]
        %v462 = vld [vmem:[%s452 + $0x48] sm:$0xff]
        %v464 = vsel %vm365, %v450, 0
        %v467 = vsel %vm365, %v451, 0
        %469 = vmatpush.msra.mxu0 0.0
        %470 = vmatpush.msra.mxu0 0.0
        %471 = vmatpush.msra.mxu0 0.0
        %472 = vmatpush.msra.mxu0 0.0
        %473 = vmatpush.msra.mxu0 0.0
        %474 = vmatpush.msra.mxu0 0.0
        %475 = vmatpush.msra.mxu0 %v462
        %476 = vmatpush.msra.mxu0 %v461
        %477 = vmatpush.msra.mxu0 %v460
        %478 = vmatpush.msra.mxu0 %v459
        %479 = vmatpush.msra.mxu0 %v458
        %480 = vmatpush.msra.mxu0 %v457
        %481 = vmatpush.msra.mxu0 %v456
        %482 = vmatpush.msra.mxu0 %v455
        %483 = vmatpush.msra.mxu0 %v454
        %484 = vmatpush.msra.mxu0 %v453
        %485 = vmatmul.f32.gmra.mxu0 %v464
        %v486 = vpop.f32.mrf.mxu0
        %v487 = vadd.f32 0.0, %v486
        %488 = vmatmul.f32.gmra.mxu0 %v467
        %v489 = vpop.f32.mrf.mxu0
        %v490 = vadd.f32 0.0, %v489
        %491 = vdwg.mxu0
        %v493 = vsel %vm365, %v340, 0
        %v496 = vsel %vm365, %v341, 0
        %498 = vmatpush.msra.mxu0 0.0
        %499 = vmatpush.msra.mxu0 0.0
        %500 = vmatpush.msra.mxu0 0.0
        %501 = vmatpush.msra.mxu0 0.0
        %502 = vmatpush.msra.mxu0 0.0
        %503 = vmatpush.msra.mxu0 0.0
        %504 = vmatpush.msra.mxu0 %v351
        %505 = vmatpush.msra.mxu0 %v350
        %506 = vmatpush.msra.mxu0 %v349
        %507 = vmatpush.msra.mxu0 %v348
        %508 = vmatpush.msra.mxu0 %v347
        %509 = vmatpush.msra.mxu0 %v346
        %510 = vmatpush.msra.mxu0 %v345
        %511 = vmatpush.msra.mxu0 %v344
        %512 = vmatpush.msra.mxu0 %v343
        %513 = vmatpush.msra.mxu0 %v342
        %514 = vmatmul.f32.gmra.mxu0 %v493
        %v515 = vpop.f32.mrf.mxu0
        %v516 = vadd.f32 %v390, %v515
        %517 = vmatmul.f32.gmra.mxu0 %v496
        %v518 = vpop.f32.mrf.mxu0
        %v519 = vadd.f32 %v393, %v518
        %520 = vdwg.mxu0
        %v522 = vsel %vm365, %v395, 0
        %v525 = vsel %vm365, %v396, 0
        %527 = vmatpush.msra.mxu0 0.0
        %528 = vmatpush.msra.mxu0 0.0
        %529 = vmatpush.msra.mxu0 0.0
        %530 = vmatpush.msra.mxu0 0.0
        %531 = vmatpush.msra.mxu0 0.0
        %532 = vmatpush.msra.mxu0 0.0
        %533 = vmatpush.msra.mxu0 %v407
        %534 = vmatpush.msra.mxu0 %v406
        %535 = vmatpush.msra.mxu0 %v405
        %536 = vmatpush.msra.mxu0 %v404
        %537 = vmatpush.msra.mxu0 %v403
        %538 = vmatpush.msra.mxu0 %v402
        %539 = vmatpush.msra.mxu0 %v401
        %540 = vmatpush.msra.mxu0 %v400
        %541 = vmatpush.msra.mxu0 %v399
        %542 = vmatpush.msra.mxu0 %v398
        %543 = vmatmul.f32.gmra.mxu0 %v522
        %v544 = vpop.f32.mrf.mxu0
        %v545 = vadd.f32 %v445, %v544
        %546 = vmatmul.f32.gmra.mxu0 %v525
        %v547 = vpop.f32.mrf.mxu0
        %v548 = vadd.f32 %v448, %v547
        %549 = vdwg.mxu0
        %v550 = vadd.f32 %v516, %v545
        %v551 = vadd.f32 %v519, %v548
        %v552 = vadd.f32 %v550, %v487
        %v553 = vadd.f32 %v551, %v490
        %v554 = vld [vmem:[%s2] sm:$0x1]
        %v556 = vperm.slane %v554, 0
        %v558 = vadd.f32 %v552, %v556
        %v559 = vadd.f32 %v553, %v556
        %v560 = vmax.f32 %v558, 0.0
        %v561 = vmax.f32 %v559, 0.0
        %v562 = vld [vmem:[%s3] sm:$0xff]
        %v563 = vld [vmem:[%s3 + $0x8] sm:$0xff]
        %v564 = vld [vmem:[%s3 + $0x10] sm:$0xff]
        %v565 = vld [vmem:[%s3 + $0x18] sm:$0xff]
        %v566 = vld [vmem:[%s3 + $0x20] sm:$0xff]
        %v567 = vld [vmem:[%s3 + $0x28] sm:$0xff]
        %v568 = vld [vmem:[%s3 + $0x30] sm:$0xff]
        %v569 = vld [vmem:[%s3 + $0x38] sm:$0xff]
        %v570 = vld [vmem:[%s3 + $0x40] sm:$0xff]
        %v571 = vld [vmem:[%s3 + $0x48] sm:$0xff]
        %v572 = vld [vmem:[%s3 + $0x50] sm:$0xff]
        %v573 = vld [vmem:[%s3 + $0x58] sm:$0xff]
        %v574 = vld [vmem:[%s3 + $0x60] sm:$0xff]
        %v575 = vld [vmem:[%s3 + $0x68] sm:$0xff]
        %v576 = vld [vmem:[%s3 + $0x70] sm:$0xff]
        %v577 = vld [vmem:[%s3 + $0x78] sm:$0xff]
        %v578 = vld [vmem:[%s3 + $0x80] sm:$0xff]
        %v579 = vld [vmem:[%s3 + $0x88] sm:$0xff]
        %v580 = vld [vmem:[%s3 + $0x90] sm:$0xff]
        %v581 = vld [vmem:[%s3 + $0x98] sm:$0xff]
        %v582 = vld [vmem:[%s3 + $0xa0] sm:$0xff]
        %v583 = vld [vmem:[%s3 + $0xa8] sm:$0xff]
        %v584 = vld [vmem:[%s3 + $0xb0] sm:$0xff]
        %v585 = vld [vmem:[%s3 + $0xb8] sm:$0xff]
        %v586 = vld [vmem:[%s3 + $0xc0] sm:$0xff]
        %v587 = vld [vmem:[%s3 + $0xc8] sm:$0xff]
        %v588 = vld [vmem:[%s3 + $0xd0] sm:$0xff]
        %v589 = vld [vmem:[%s3 + $0xd8] sm:$0xff]
        %v590 = vld [vmem:[%s3 + $0xe0] sm:$0xff]
        %v591 = vld [vmem:[%s3 + $0xe8] sm:$0xff]
        %v592 = vld [vmem:[%s3 + $0xf0] sm:$0xff]
        %v593 = vld [vmem:[%s3 + $0xf8] sm:$0xff]
        %v594 = vld [vmem:[%s3 + $0x100] sm:$0xff]
        %v595 = vld [vmem:[%s3 + $0x108] sm:$0xff]
        %v596 = vld [vmem:[%s3 + $0x110] sm:$0xff]
        %v597 = vld [vmem:[%s3 + $0x118] sm:$0xff]
        %v598 = vld [vmem:[%s3 + $0x120] sm:$0xff]
        %v599 = vld [vmem:[%s3 + $0x128] sm:$0xff]
        %v600 = vld [vmem:[%s3 + $0x130] sm:$0xff]
        %v601 = vld [vmem:[%s3 + $0x138] sm:$0xff]
        %v602 = vld [vmem:[%s3 + $0x140] sm:$0xff]
        %v603 = vld [vmem:[%s3 + $0x148] sm:$0xff]
        %v604 = vld [vmem:[%s3 + $0x150] sm:$0xff]
        %v605 = vld [vmem:[%s3 + $0x158] sm:$0xff]
        %v606 = vld [vmem:[%s3 + $0x160] sm:$0xff]
        %v607 = vld [vmem:[%s3 + $0x168] sm:$0xff]
        %v608 = vld [vmem:[%s3 + $0x170] sm:$0xff]
        %v609 = vld [vmem:[%s3 + $0x178] sm:$0xff]
        %v610 = vld [vmem:[%s3 + $0x180] sm:$0xff]
        %v611 = vld [vmem:[%s3 + $0x188] sm:$0xff]
        %v612 = vld [vmem:[%s3 + $0x190] sm:$0xff]
        %v613 = vld [vmem:[%s3 + $0x198] sm:$0xff]
        %v614 = vld [vmem:[%s3 + $0x1a0] sm:$0xff]
        %v615 = vld [vmem:[%s3 + $0x1a8] sm:$0xff]
        %v616 = vld [vmem:[%s3 + $0x1b0] sm:$0xff]
        %v617 = vld [vmem:[%s3 + $0x1b8] sm:$0xff]
        %v618 = vld [vmem:[%s3 + $0x1c0] sm:$0xff]
        %v619 = vld [vmem:[%s3 + $0x1c8] sm:$0xff]
        %v620 = vld [vmem:[%s3 + $0x1d0] sm:$0xff]
        %v621 = vld [vmem:[%s3 + $0x1d8] sm:$0xff]
        %v622 = vld [vmem:[%s3 + $0x1e0] sm:$0xff]
        %v623 = vld [vmem:[%s3 + $0x1e8] sm:$0xff]
        %v624 = vld [vmem:[%s3 + $0x1f0] sm:$0xff]
        %v625 = vld [vmem:[%s3 + $0x1f8] sm:$0xff]
        %v626 = vld [vmem:[%s3 + $0x200] sm:$0xff]
        %v627 = vld [vmem:[%s3 + $0x208] sm:$0xff]
        %v628 = vld [vmem:[%s3 + $0x210] sm:$0xff]
        %v629 = vld [vmem:[%s3 + $0x218] sm:$0xff]
        %v630 = vld [vmem:[%s3 + $0x220] sm:$0xff]
        %v631 = vld [vmem:[%s3 + $0x228] sm:$0xff]
        %v632 = vld [vmem:[%s3 + $0x230] sm:$0xff]
        %v633 = vld [vmem:[%s3 + $0x238] sm:$0xff]
        %v634 = vld [vmem:[%s3 + $0x240] sm:$0xff]
        %v635 = vld [vmem:[%s3 + $0x248] sm:$0xff]
        %v636 = vld [vmem:[%s3 + $0x250] sm:$0xff]
        %v637 = vld [vmem:[%s3 + $0x258] sm:$0xff]
        %v638 = vld [vmem:[%s3 + $0x260] sm:$0xff]
        %v639 = vld [vmem:[%s3 + $0x268] sm:$0xff]
        %v640 = vld [vmem:[%s3 + $0x270] sm:$0xff]
        %v641 = vld [vmem:[%s3 + $0x278] sm:$0xff]
        %v642 = vld [vmem:[%s3 + $0x280] sm:$0xff]
        %v643 = vld [vmem:[%s3 + $0x288] sm:$0xff]
        %v644 = vld [vmem:[%s3 + $0x290] sm:$0xff]
        %v645 = vld [vmem:[%s3 + $0x298] sm:$0xff]
        %v646 = vld [vmem:[%s3 + $0x2a0] sm:$0xff]
        %v647 = vld [vmem:[%s3 + $0x2a8] sm:$0xff]
        %v648 = vld [vmem:[%s3 + $0x2b0] sm:$0xff]
        %v649 = vld [vmem:[%s3 + $0x2b8] sm:$0xff]
        %v650 = vld [vmem:[%s3 + $0x2c0] sm:$0xff]
        %v651 = vld [vmem:[%s3 + $0x2c8] sm:$0xff]
        %v652 = vld [vmem:[%s3 + $0x2d0] sm:$0xff]
        %v653 = vld [vmem:[%s3 + $0x2d8] sm:$0xff]
        %v654 = vld [vmem:[%s3 + $0x2e0] sm:$0xff]
        %v655 = vld [vmem:[%s3 + $0x2e8] sm:$0xff]
        %v656 = vld [vmem:[%s3 + $0x2f0] sm:$0xff]
        %v657 = vld [vmem:[%s3 + $0x2f8] sm:$0xff]
        %658 = vmatpush.msra.mxu0 %v652
        %659 = vmatpush.msra.mxu0 %v646
        %660 = vmatpush.msra.mxu0 %v640
        %661 = vmatpush.msra.mxu0 %v634
        %662 = vmatpush.msra.mxu0 %v628
        %663 = vmatpush.msra.mxu0 %v622
        %664 = vmatpush.msra.mxu0 %v616
        %665 = vmatpush.msra.mxu0 %v610
        %666 = vmatpush.msra.mxu0 %v604
        %667 = vmatpush.msra.mxu0 %v598
        %668 = vmatpush.msra.mxu0 %v592
        %669 = vmatpush.msra.mxu0 %v586
        %670 = vmatpush.msra.mxu0 %v580
        %671 = vmatpush.msra.mxu0 %v574
        %672 = vmatpush.msra.mxu0 %v568
        %673 = vmatpush.msra.mxu0 %v562
        %674 = vmatmul.f32.gmra.mxu0 %v560
        %v675 = vpop.f32.mrf.mxu0
        %v676 = vadd.f32 0.0, %v675
        %677 = vmatmul.f32.gmra.mxu0 %v561
        %v678 = vpop.f32.mrf.mxu0
        %v679 = vadd.f32 0.0, %v678
        %680 = vdwg.mxu0
        %681 = vmatpush.msra.mxu0 %v653
        %682 = vmatpush.msra.mxu0 %v647
        %683 = vmatpush.msra.mxu0 %v641
        %684 = vmatpush.msra.mxu0 %v635
        %685 = vmatpush.msra.mxu0 %v629
        %686 = vmatpush.msra.mxu0 %v623
        %687 = vmatpush.msra.mxu0 %v617
        %688 = vmatpush.msra.mxu0 %v611
        %689 = vmatpush.msra.mxu0 %v605
        %690 = vmatpush.msra.mxu0 %v599
        %691 = vmatpush.msra.mxu0 %v593
        %692 = vmatpush.msra.mxu0 %v587
        %693 = vmatpush.msra.mxu0 %v581
        %694 = vmatpush.msra.mxu0 %v575
        %695 = vmatpush.msra.mxu0 %v569
        %696 = vmatpush.msra.mxu0 %v563
        %697 = vmatmul.f32.gmra.mxu0 %v560
        %v698 = vpop.f32.mrf.mxu0
        %v699 = vadd.f32 0.0, %v698
        %700 = vmatmul.f32.gmra.mxu0 %v561
        %v701 = vpop.f32.mrf.mxu0
        %v702 = vadd.f32 0.0, %v701
        %703 = vdwg.mxu0
        %704 = vmatpush.msra.mxu0 %v654
        %705 = vmatpush.msra.mxu0 %v648
        %706 = vmatpush.msra.mxu0 %v642
        %707 = vmatpush.msra.mxu0 %v636
        %708 = vmatpush.msra.mxu0 %v630
        %709 = vmatpush.msra.mxu0 %v624
        %710 = vmatpush.msra.mxu0 %v618
        %711 = vmatpush.msra.mxu0 %v612
        %712 = vmatpush.msra.mxu0 %v606
        %713 = vmatpush.msra.mxu0 %v600
        %714 = vmatpush.msra.mxu0 %v594
        %715 = vmatpush.msra.mxu0 %v588
        %716 = vmatpush.msra.mxu0 %v582
        %717 = vmatpush.msra.mxu0 %v576
        %718 = vmatpush.msra.mxu0 %v570
        %719 = vmatpush.msra.mxu0 %v564
        %720 = vmatmul.f32.gmra.mxu0 %v560
        %v721 = vpop.f32.mrf.mxu0
        %v722 = vadd.f32 0.0, %v721
        %723 = vmatmul.f32.gmra.mxu0 %v561
        %v724 = vpop.f32.mrf.mxu0
        %v725 = vadd.f32 0.0, %v724
        %726 = vdwg.mxu0
        %727 = vmatpush.msra.mxu0 %v655
        %728 = vmatpush.msra.mxu0 %v649
        %729 = vmatpush.msra.mxu0 %v643
        %730 = vmatpush.msra.mxu0 %v637
        %731 = vmatpush.msra.mxu0 %v631
        %732 = vmatpush.msra.mxu0 %v625
        %733 = vmatpush.msra.mxu0 %v619
        %734 = vmatpush.msra.mxu0 %v613
        %735 = vmatpush.msra.mxu0 %v607
        %736 = vmatpush.msra.mxu0 %v601
        %737 = vmatpush.msra.mxu0 %v595
        %738 = vmatpush.msra.mxu0 %v589
        %739 = vmatpush.msra.mxu0 %v583
        %740 = vmatpush.msra.mxu0 %v577
        %741 = vmatpush.msra.mxu0 %v571
        %742 = vmatpush.msra.mxu0 %v565
        %743 = vmatmul.f32.gmra.mxu0 %v560
        %v744 = vpop.f32.mrf.mxu0
        %v745 = vadd.f32 0.0, %v744
        %746 = vmatmul.f32.gmra.mxu0 %v561
        %v747 = vpop.f32.mrf.mxu0
        %v748 = vadd.f32 0.0, %v747
        %749 = vdwg.mxu0
        %750 = vmatpush.msra.mxu0 %v656
        %751 = vmatpush.msra.mxu0 %v650
        %752 = vmatpush.msra.mxu0 %v644
        %753 = vmatpush.msra.mxu0 %v638
        %754 = vmatpush.msra.mxu0 %v632
        %755 = vmatpush.msra.mxu0 %v626
        %756 = vmatpush.msra.mxu0 %v620
        %757 = vmatpush.msra.mxu0 %v614
        %758 = vmatpush.msra.mxu0 %v608
        %759 = vmatpush.msra.mxu0 %v602
        %760 = vmatpush.msra.mxu0 %v596
        %761 = vmatpush.msra.mxu0 %v590
        %762 = vmatpush.msra.mxu0 %v584
        %763 = vmatpush.msra.mxu0 %v578
        %764 = vmatpush.msra.mxu0 %v572
        %765 = vmatpush.msra.mxu0 %v566
        %766 = vmatmul.f32.gmra.mxu0 %v560
        %v767 = vpop.f32.mrf.mxu0
        %v768 = vadd.f32 0.0, %v767
        %769 = vmatmul.f32.gmra.mxu0 %v561
        %v770 = vpop.f32.mrf.mxu0
        %v771 = vadd.f32 0.0, %v770
        %772 = vdwg.mxu0
        %773 = vmatpush.msra.mxu0 %v657
        %774 = vmatpush.msra.mxu0 %v651
        %775 = vmatpush.msra.mxu0 %v645
        %776 = vmatpush.msra.mxu0 %v639
        %777 = vmatpush.msra.mxu0 %v633
        %778 = vmatpush.msra.mxu0 %v627
        %779 = vmatpush.msra.mxu0 %v621
        %780 = vmatpush.msra.mxu0 %v615
        %781 = vmatpush.msra.mxu0 %v609
        %782 = vmatpush.msra.mxu0 %v603
        %783 = vmatpush.msra.mxu0 %v597
        %784 = vmatpush.msra.mxu0 %v591
        %785 = vmatpush.msra.mxu0 %v585
        %786 = vmatpush.msra.mxu0 %v579
        %787 = vmatpush.msra.mxu0 %v573
        %788 = vmatpush.msra.mxu0 %v567
        %789 = vmatmul.f32.gmra.mxu0 %v560
        %v790 = vpop.f32.mrf.mxu0
        %v791 = vadd.f32 0.0, %v790
        %792 = vmatmul.f32.gmra.mxu0 %v561
        %v793 = vpop.f32.mrf.mxu0
        %v794 = vadd.f32 0.0, %v793
        %795 = vdwg.mxu0
        %v796 = vld [vmem:[%s4] sm:$0xff]
        %v797 = vld [vmem:[%s4 + $0x8] sm:$0xff]
        %vm798 = vcmask 130048
        %v800 = vsel %vm798, %v796, 0
        %v803 = vsel %vm798, %v797, 0
        %805 = vmatpush.msra.mxu0 0.0
        %806 = vmatpush.msra.mxu0 0.0
        %807 = vmatpush.msra.mxu0 0.0
        %808 = vmatpush.msra.mxu0 0.0
        %809 = vmatpush.msra.mxu0 0.0
        %810 = vmatpush.msra.mxu0 0.0
        %811 = vmatpush.msra.mxu0 0.0
        %812 = vmatpush.msra.mxu0 0.0
        %813 = vmatpush.msra.mxu0 0.0
        %814 = vmatpush.msra.mxu0 0.0
        %815 = vmatpush.msra.mxu0 0.0
        %816 = vmatpush.msra.mxu0 0.0
        %817 = vmatpush.msra.mxu0 0.0
        %818 = vmatpush.msra.mxu0 0.0
        %819 = vmatpush.msra.mxu0 %v771
        %820 = vmatpush.msra.mxu0 %v768
        %821 = vmatmul.f32.gmra.mxu0 %v800
        %v822 = vpop.f32.mrf.mxu0
        %v823 = vadd.f32 0.0, %v822
        %824 = vmatmul.f32.gmra.mxu0 %v803
        %v825 = vpop.f32.mrf.mxu0
        %v826 = vadd.f32 0.0, %v825
        %827 = vdwg.mxu0
        %828 = vmatpush.msra.mxu0 0.0
        %829 = vmatpush.msra.mxu0 0.0
        %830 = vmatpush.msra.mxu0 0.0
        %831 = vmatpush.msra.mxu0 0.0
        %832 = vmatpush.msra.mxu0 0.0
        %833 = vmatpush.msra.mxu0 0.0
        %834 = vmatpush.msra.mxu0 0.0
        %835 = vmatpush.msra.mxu0 0.0
        %836 = vmatpush.msra.mxu0 0.0
        %837 = vmatpush.msra.mxu0 0.0
        %838 = vmatpush.msra.mxu0 0.0
        %839 = vmatpush.msra.mxu0 0.0
        %840 = vmatpush.msra.mxu0 0.0
        %841 = vmatpush.msra.mxu0 0.0
        %842 = vmatpush.msra.mxu0 %v794
        %843 = vmatpush.msra.mxu0 %v791
        %844 = vmatmul.f32.gmra.mxu0 %v800
        %v845 = vpop.f32.mrf.mxu0
        %v846 = vadd.f32 0.0, %v845
        %847 = vmatmul.f32.gmra.mxu0 %v803
        %v848 = vpop.f32.mrf.mxu0
        %v849 = vadd.f32 0.0, %v848
        %850 = vdwg.mxu0
        %v851 = vadd.f32 %v722, %v823
        %v852 = vadd.f32 %v745, %v846
        %v853 = vadd.f32 %v725, %v826
        %v854 = vadd.f32 %v748, %v849
        %v855 = vld [vmem:[#allocation4] sm:$0xff]
        %v856 = vld [vmem:[#allocation4 + $0x8] sm:$0xff]
        %v857 = vld [vmem:[#allocation4 + $0x10] sm:$0xff]
        %v858 = vld [vmem:[#allocation4 + $0x18] sm:$0xff]
        %v859 = vld [vmem:[#allocation4 + $0x20] sm:$0xff]
        %v860 = vld [vmem:[#allocation4 + $0x28] sm:$0xff]
        %v861 = vld [vmem:[#allocation4 + $0x30] sm:$0xff]
        %v862 = vld [vmem:[#allocation4 + $0x38] sm:$0xff]
        %v863 = vld [vmem:[#allocation4 + $0x40] sm:$0xff]
        %v864 = vld [vmem:[#allocation4 + $0x48] sm:$0xff]
        %v865 = vld [vmem:[#allocation4 + $0x50] sm:$0xff]
        %v866 = vld [vmem:[#allocation4 + $0x58] sm:$0xff]
        %v867 = vld [vmem:[#allocation4 + $0x60] sm:$0xff]
        %v868 = vld [vmem:[#allocation4 + $0x68] sm:$0xff]
        %v869 = vld [vmem:[#allocation4 + $0x70] sm:$0xff]
        %v870 = vld [vmem:[#allocation4 + $0x78] sm:$0xff]
        %v871 = vld [vmem:[#allocation4 + $0x80] sm:$0xff]
        %v872 = vld [vmem:[#allocation4 + $0x88] sm:$0xff]
        %v873 = vld [vmem:[#allocation4 + $0x90] sm:$0xff]
        %v874 = vld [vmem:[#allocation4 + $0x98] sm:$0xff]
        %875 = vmatpush.msra.mxu0 0.0
        %876 = vmatpush.msra.mxu0 0.0
        %877 = vmatpush.msra.mxu0 0.0
        %878 = vmatpush.msra.mxu0 0.0
        %879 = vmatpush.msra.mxu0 0.0
        %880 = vmatpush.msra.mxu0 0.0
        %881 = vmatpush.msra.mxu0 %v873
        %882 = vmatpush.msra.mxu0 %v871
        %883 = vmatpush.msra.mxu0 %v869
        %884 = vmatpush.msra.mxu0 %v867
        %885 = vmatpush.msra.mxu0 %v865
        %886 = vmatpush.msra.mxu0 %v863
        %887 = vmatpush.msra.mxu0 %v861
        %888 = vmatpush.msra.mxu0 %v859
        %889 = vmatpush.msra.mxu0 %v857
        %890 = vmatpush.msra.mxu0 %v855
        %891 = vmatmul.f32.gmra.mxu0 %v522
        %v892 = vpop.f32.mrf.mxu0
        %v893 = vadd.f32 0.0, %v892
        %894 = vmatmul.f32.gmra.mxu0 %v525
        %v895 = vpop.f32.mrf.mxu0
        %v896 = vadd.f32 0.0, %v895
        %897 = vdwg.mxu0
        %898 = vmatpush.msra.mxu0 0.0
        %899 = vmatpush.msra.mxu0 0.0
        %900 = vmatpush.msra.mxu0 0.0
        %901 = vmatpush.msra.mxu0 0.0
        %902 = vmatpush.msra.mxu0 0.0
        %903 = vmatpush.msra.mxu0 0.0
        %904 = vmatpush.msra.mxu0 %v874
        %905 = vmatpush.msra.mxu0 %v872
        %906 = vmatpush.msra.mxu0 %v870
        %907 = vmatpush.msra.mxu0 %v868
        %908 = vmatpush.msra.mxu0 %v866
        %909 = vmatpush.msra.mxu0 %v864
        %910 = vmatpush.msra.mxu0 %v862
        %911 = vmatpush.msra.mxu0 %v860
        %912 = vmatpush.msra.mxu0 %v858
        %913 = vmatpush.msra.mxu0 %v856
        %914 = vmatmul.f32.gmra.mxu0 %v522
        %v915 = vpop.f32.mrf.mxu0
        %v916 = vadd.f32 0.0, %v915
        %917 = vmatmul.f32.gmra.mxu0 %v525
        %v918 = vpop.f32.mrf.mxu0
        %v919 = vadd.f32 0.0, %v918
        %920 = vdwg.mxu0
        %v921 = vld [vmem:[%s5] sm:$0xff]
        %v922 = vld [vmem:[%s5 + $0x8] sm:$0xff]
        %v923 = vld [vmem:[%s5 + $0x10] sm:$0xff]
        %v924 = vld [vmem:[%s5 + $0x18] sm:$0xff]
        %v926 = vsel %vm798, %v921, 0
        %v929 = vsel %vm798, %v922, 0
        %v932 = vsel %vm798, %v923, 0
        %v935 = vsel %vm798, %v924, 0
        %937 = vmatpush.msra.mxu0 0.0
        %938 = vmatpush.msra.mxu0 0.0
        %939 = vmatpush.msra.mxu0 0.0
        %940 = vmatpush.msra.mxu0 0.0
        %941 = vmatpush.msra.mxu0 0.0
        %942 = vmatpush.msra.mxu0 0.0
        %943 = vmatpush.msra.mxu0 0.0
        %944 = vmatpush.msra.mxu0 0.0
        %945 = vmatpush.msra.mxu0 0.0
        %946 = vmatpush.msra.mxu0 0.0
        %947 = vmatpush.msra.mxu0 0.0
        %948 = vmatpush.msra.mxu0 0.0
        %949 = vmatpush.msra.mxu0 0.0
        %950 = vmatpush.msra.mxu0 0.0
        %951 = vmatpush.msra.mxu0 %v896
        %952 = vmatpush.msra.mxu0 %v893
        %953 = vmatmul.f32.gmra.mxu0 %v926
        %v954 = vpop.f32.mrf.mxu0
        %v955 = vadd.f32 0.0, %v954
        %956 = vmatmul.f32.gmra.mxu0 %v929
        %v957 = vpop.f32.mrf.mxu0
        %v958 = vadd.f32 0.0, %v957
        %959 = vmatmul.f32.gmra.mxu0 %v932
        %v960 = vpop.f32.mrf.mxu0
        %v961 = vadd.f32 0.0, %v960
        %962 = vmatmul.f32.gmra.mxu0 %v935
        %v963 = vpop.f32.mrf.mxu0
        %v964 = vadd.f32 0.0, %v963
        %965 = vdwg.mxu0
        %966 = vmatpush.msra.mxu0 0.0
        %967 = vmatpush.msra.mxu0 0.0
        %968 = vmatpush.msra.mxu0 0.0
        %969 = vmatpush.msra.mxu0 0.0
        %970 = vmatpush.msra.mxu0 0.0
        %971 = vmatpush.msra.mxu0 0.0
        %972 = vmatpush.msra.mxu0 0.0
        %973 = vmatpush.msra.mxu0 0.0
        %974 = vmatpush.msra.mxu0 0.0
        %975 = vmatpush.msra.mxu0 0.0
        %976 = vmatpush.msra.mxu0 0.0
        %977 = vmatpush.msra.mxu0 0.0
        %978 = vmatpush.msra.mxu0 0.0
        %979 = vmatpush.msra.mxu0 0.0
        %980 = vmatpush.msra.mxu0 %v919
        %981 = vmatpush.msra.mxu0 %v916
        %982 = vmatmul.f32.gmra.mxu0 %v926
        %v983 = vpop.f32.mrf.mxu0
        %v984 = vadd.f32 0.0, %v983
        %985 = vmatmul.f32.gmra.mxu0 %v929
        %v986 = vpop.f32.mrf.mxu0
        %v987 = vadd.f32 0.0, %v986
        %988 = vmatmul.f32.gmra.mxu0 %v932
        %v989 = vpop.f32.mrf.mxu0
        %v990 = vadd.f32 0.0, %v989
        %991 = vmatmul.f32.gmra.mxu0 %v935
        %v992 = vpop.f32.mrf.mxu0
        %v993 = vadd.f32 0.0, %v992
        %994 = vdwg.mxu0
        %v995 = vld [vmem:[%s7] sm:$0x3]
        %v996 = vadd.f32 %v676, %v955
        %v997 = vadd.f32 %v699, %v984
        %v998 = vadd.f32 %v679, %v958
        %v999 = vadd.f32 %v702, %v987
        %v1001 = vperm.slane %v995, 0
        %v1002 = vperm.slane %v995, 1
        %v1005 = vadd.f32 %v996, %v1001
        %v1006 = vadd.f32 %v997, %v1002
        %v1007 = vadd.f32 %v998, %v1001
        %v1008 = vadd.f32 %v999, %v1002
        %v1009 = vmax.f32 %v1005, 0.0
        %v1010 = vmax.f32 %v1006, 0.0
        %v1011 = vmax.f32 %v1007, 0.0
        %v1012 = vmax.f32 %v1008, 0.0
        %1013 = vst [vmem:[%s339] sm:$0xff] %v1009
        %1014 = vst [vmem:[%s339 + $0x8] sm:$0xff] %v1010
        %1015 = vst [vmem:[%s339 + $0x10] sm:$0xff] %v1011
        %1016 = vst [vmem:[%s339 + $0x18] sm:$0xff] %v1012
        %v1017 = vadd.f32 %v851, %v961
        %v1018 = vadd.f32 %v852, %v990
        %v1019 = vadd.f32 %v853, %v964
        %v1020 = vadd.f32 %v854, %v993
        %v1021 = vadd.f32 %v1017, %v1001
        %v1022 = vadd.f32 %v1018, %v1002
        %v1023 = vadd.f32 %v1019, %v1001
        %v1024 = vadd.f32 %v1020, %v1002
        %v1025 = vmax.f32 %v1021, 0.0
        %v1026 = vmax.f32 %v1022, 0.0
        %v1027 = vmax.f32 %v1023, 0.0
        %v1028 = vmax.f32 %v1024, 0.0
        %s1029 = scalar_lea.vmem %s339, 32
        %1030 = vst [vmem:[%s1029] sm:$0xff] %v1025
        %1031 = vst [vmem:[%s1029 + $0x8] sm:$0xff] %v1026
        %1032 = vst [vmem:[%s1029 + $0x10] sm:$0xff] %v1027
        %1033 = vst [vmem:[%s1029 + $0x18] sm:$0xff] %v1028
        %p1034 = scmp.lt.s32.totalorder %s21, 1
        %s1035 = scalar_select %p1034, %s21, 1
        %s1036 = smul.addr %s1035, 8
        %s1037 = smul.addr %s1036, 8
        %s1038 = scalar_lea.vmem %s8, %s1037
        // Predicated region
        $region61: #{residual_up_projection.1} parent=51 // pred_check
          %p1039 = pneg %p212
        $region62: #{residual_up_projection.1} parent=51 // pred_check_branch
          %1041 = sbr.rel (%p1039) target = $region64
        $region63: #{residual_up_projection.1} parent=51 // pred_region
          _
        $region64: #{residual_up_projection.1} parent=51 // pred_fallthru
          _
      $region52: #{residual_up_projection.1} parent=5 // pred_fallthru
        _
      %p1042 = scmp.le.s32.totalorder 2, %s16
      // Predicated region
      $region65: #{residual_up_projection.1} parent=5 // pred_check
        %p1043 = pneg %p1042
      $region66: #{residual_up_projection.1} parent=5 // pred_check_branch
        %1045 = sbr.rel (%p1043) target = $region68
      $region67: #{residual_up_projection.1} parent=5 // pred_region
        %s1046 = ssub.s32 %s16, 2
        // Predicated region
        $region69: #{residual_up_projection.1} parent=67 // pred_check
          %p1047 = pneg %p218
        $region70: #{residual_up_projection.1} parent=67 // pred_check_branch
          %1049 = sbr.rel (%p1047) target = $region72
        $region71: #{residual_up_projection.1} parent=67 // pred_region
          %p1050 = scmp.lt.s32.totalorder %s22, 1
          %s1051 = scalar_select %p1050, %s22, 1
          %s1052 = smul.addr %s1051, 8
          %s1053 = smul.addr %s1052, 8
          %s1054 = scalar_lea.vmem %s8, %s1053
        $region72: #{residual_up_projection.1} parent=67 // pred_fallthru
          _
      $region68: #{residual_up_projection.1} parent=5 // pred_fallthru
        _
    $region6: #{residual_up_projection.1} parent=1 // loop_footer
      %s20 = sadd.s32 1, %s16
    $region7: #{residual_up_projection.1} parent=1 // loop_footer_branch
      %15 = sbr.rel target = $region3
    $region8: #{residual_up_projection.1} parent=1 // loop_exit
      _
    %1055 = vsyncpa [#allocation3], 1
    %s1056 = scalar_lea.sflag [#allocation3], 1
    %1057 = vsyncpa %s1056, 1
    %1058 = vsyncpa [#allocation5], 1

</llo_original>
